<compile_context>
chip_gen: v7x
topology: tpu7x:2x2x1
jax: 0.10.0
libtpu: 0.0.40
codegen_flags: <defaults>
</compile_context>

<pallas_src>
import jax
import jax.numpy as jnp
from jax.experimental import pallas as pl
from jax.experimental.pallas import tpu as pltpu


def _make_kernel(kh_taps, out_rows, stride):
    def kernel(x_ref, w_ref, shift_ref, o_ref):
        # x_ref:     (1, Hp, Wp*Cin)        padded image rows (bf16)
        # w_ref:     (KH*Wp*Cin, Wo*Cout)   BN-scale-folded row-Toeplitz weights (bf16)
        # shift_ref: (1, Wo*Cout)           folded BN shift, tiled over Wo (f32)
        # o_ref:     (1, Ho, Wo*Cout)       lane-dense output slab
        x = x_ref[0]
        span = (out_rows - 1) * stride + 1
        rows = [x[kh:kh + span:stride, :] for kh in range(kh_taps)]
        lhs = jnp.concatenate(rows, axis=-1) if kh_taps > 1 else rows[0]
        # Single MXU matmul; f32 accumulation.
        acc = jnp.dot(lhs, w_ref[...], preferred_element_type=jnp.float32)
        y = acc + shift_ref[...]
        y = jnp.maximum(y, 0.1 * y)                 # LeakyReLU(0.1), f32 epilogue
        o_ref[0] = y.astype(o_ref.dtype)
    return kernel


def cnn_forward(x_nchw, weight_oihw, gamma, beta, running_mean, running_var,
                *, stride=1, padding=1, eps=1e-5, nchw_out=True):
    """Equivalent of CNN.forward (eval-mode BatchNorm using running stats)."""
    N, Cin, H, W = x_nchw.shape
    Cout, _, KH, KW = weight_oihw.shape
    Hp, Wp = H + 2 * padding, W + 2 * padding
    Ho = (Hp - KH) // stride + 1
    Wo = (Wp - KW) // stride + 1
    K_lhs = KH * Wp * Cin
    N_out = Wo * Cout

    # ---- fold BatchNorm (eval-mode running stats) into conv weights ---------
    inv_std = 1.0 / jnp.sqrt(running_var.astype(jnp.float32) + eps)
    scale = gamma.astype(jnp.float32) * inv_std                       # (Cout,)
    shift = beta.astype(jnp.float32) - running_mean.astype(jnp.float32) * scale
    w_f = weight_oihw.astype(jnp.float32) * scale[:, None, None, None]
    w_khkwic = jnp.transpose(w_f, (2, 3, 1, 0))                       # (KH, KW, Cin, Cout)

    # ---- row-Toeplitz weights: (KH*Wp*Cin, Wo*Cout), bf16 -------------------
    wt = jnp.zeros((KH, Wp, Cin, Wo, Cout), jnp.float32)
    for kw in range(KW):
        for wo in range(Wo):
            wt = wt.at[:, wo * stride + kw, :, wo, :].set(w_khkwic[:, kw])
    wt = wt.reshape(K_lhs, N_out).astype(jnp.bfloat16)
    shift_row = jnp.tile(shift, Wo).reshape(1, N_out)                 # f32, (1, Wo*Cout)

    # ---- input: NCHW -> zero-padded NHWC -> (N, Hp, Wp*Cin), bf16 -----------
    x = jnp.transpose(x_nchw, (0, 2, 3, 1)).astype(jnp.float32)
    x = jnp.pad(x, ((0, 0), (padding, padding), (padding, padding), (0, 0)))
    x = x.reshape(N, Hp, Wp * Cin).astype(jnp.bfloat16)

    kernel = _make_kernel(KH, Ho, stride)

    out = pl.pallas_call(
        kernel,
        out_shape=jax.ShapeDtypeStruct((N, Ho, N_out), x_nchw.dtype),
        grid_spec=pltpu.PrefetchScalarGridSpec(
            num_scalar_prefetch=0,
            grid=(N,),                                 # one big block per image
            in_specs=[
                pl.BlockSpec((1, Hp, Wp * Cin), lambda n: (n, 0, 0)),
                # Constant index_map -> DMA'd once across the grid; the ~54 KiB
                # second buffer is negligible here so pl.Buffered(1) is skipped.
                pl.BlockSpec((K_lhs, N_out), lambda n: (0, 0)),
                pl.BlockSpec((1, N_out), lambda n: (0, 0)),
            ],
            out_specs=pl.BlockSpec((1, Ho, N_out), lambda n: (n, 0, 0)),
        ),
        compiler_params=pltpu.CompilerParams(
            # N>=2 parallel steps -> both v7x TensorCores; minimal step count for
            # single-TC v5e/v6e.
            dimension_semantics=("parallel",),
            vmem_limit_bytes=32 * 1024 * 1024,         # explicit; actual ~0.15 MiB
        ),
    )(x, wt, shift_row)

    out = out.reshape(N, Ho, Wo, Cout)
    if nchw_out:
        # Matches PyTorch's NCHW output; NHWC consumers can pass nchw_out=False
        # to skip this extra HBM round-trip of the output.
        out = jnp.transpose(out, (0, 3, 1, 2))
    return out


def _reference(x_nchw, weight, gamma, beta, mean, var, *, stride=1, padding=1, eps=1e-5):
    y = jax.lax.conv_general_dilated(
        x_nchw.astype(jnp.float32), weight.astype(jnp.float32),
        window_strides=(stride, stride),
        padding=((padding, padding), (padding, padding)),
        dimension_numbers=("NCHW", "OIHW", "NCHW"))
    scale = (gamma / jnp.sqrt(var + eps)).reshape(1, -1, 1, 1)
    shift = (beta - mean * gamma / jnp.sqrt(var + eps)).reshape(1, -1, 1, 1)
    y = y * scale + shift
    return jnp.maximum(y, 0.1 * y)


if __name__ == "__main__":
    # Small shapes implied by the module: Conv2d(in=4, out=8, k=3, s=1, p=1).
    N, Cin, Cout, H, W, K = 2, 4, 8, 16, 16, 3

    key = jax.random.PRNGKey(0)
    kx, kw, kg, kb, km, kv = jax.random.split(key, 6)

    x = jax.random.normal(kx, (N, Cin, H, W), dtype=jnp.float32)
    weight = jax.random.normal(kw, (Cout, Cin, K, K), dtype=jnp.float32) * 0.1
    gamma = 1.0 + 0.1 * jax.random.normal(kg, (Cout,), dtype=jnp.float32)
    beta = 0.1 * jax.random.normal(kb, (Cout,), dtype=jnp.float32)
    running_mean = 0.1 * jax.random.normal(km, (Cout,), dtype=jnp.float32)
    running_var = 0.5 + jnp.abs(jax.random.normal(kv, (Cout,), dtype=jnp.float32))

    out = cnn_forward(x, weight, gamma, beta, running_mean, running_var,
                      stride=1, padding=1)
    out = jax.block_until_ready(out)

    ref = _reference(x, weight, gamma, beta, running_mean, running_var,
                     stride=1, padding=1)
    assert out.shape == (N, Cout, H, W), out.shape
    err = float(jnp.max(jnp.abs(out - ref)))
    # bf16 operands with f32 accumulation -> a few e-3 absolute error expected.
    assert jnp.allclose(out, ref, atol=5e-2, rtol=5e-2), err

    print("KERNEL_OK")
</pallas_src>

<mosaic_0001>
module attributes {stable_mosaic.version = 11 : i64} {
  func.func @kernel(%arg0: i32, %arg1: memref<1x18x72xbf16, #tpu.memory_space<vmem>>, %arg2: memref<216x128xbf16, #tpu.memory_space<vmem>>, %arg3: memref<1x128xf32, #tpu.memory_space<vmem>>, %arg4: memref<1x16x128xf32, #tpu.memory_space<vmem>>) attributes {dimension_semantics = [#tpu.dimension_semantics<parallel>], iteration_bounds = array<i64: 2>, scalar_prefetch = 0 : i64, scratch_operands = 0 : i64, tpu.core_type = #tpu.core_type<tc>, window_params = [{transform_indices = @transform_0, window_bounds = array<i64: 1, 18, 72>}, {pipeline_mode = #tpu.pipeline_mode<synchronous>, transform_indices = @transform_1, window_bounds = array<i64: 216, 128>}, {pipeline_mode = #tpu.pipeline_mode<synchronous>, transform_indices = @transform_2, window_bounds = array<i64: 1, 128>}, {transform_indices = @transform_3, window_bounds = array<i64: 1, 16, 128>}]} {
    %c0 = arith.constant 0 : index
    %c0_0 = arith.constant 0 : index
    %c0_1 = arith.constant 0 : index
    %0 = vector.load %arg1[%c0, %c0_0, %c0_1] : memref<1x18x72xbf16, #tpu.memory_space<vmem>>, vector<1x18x72xbf16>
    %1 = vector.shape_cast %0 : vector<1x18x72xbf16> to vector<18x72xbf16>
    %2 = vector.extract_strided_slice %1 {offsets = [0, 0], sizes = [16, 72], strides = [1, 1]} : vector<18x72xbf16> to vector<16x72xbf16>
    %3 = vector.extract_strided_slice %1 {offsets = [1, 0], sizes = [16, 72], strides = [1, 1]} : vector<18x72xbf16> to vector<16x72xbf16>
    %4 = vector.extract_strided_slice %1 {offsets = [2, 0], sizes = [16, 72], strides = [1, 1]} : vector<18x72xbf16> to vector<16x72xbf16>
    %5 = tpu.concatenate %2, %3, %4 in 1 : vector<16x72xbf16>, vector<16x72xbf16>, vector<16x72xbf16> -> vector<16x216xbf16>
    %c0_2 = arith.constant 0 : index
    %c0_3 = arith.constant 0 : index
    %6 = vector.load %arg2[%c0_2, %c0_3] : memref<216x128xbf16, #tpu.memory_space<vmem>>, vector<216x128xbf16>
    %cst = arith.constant dense<0.000000e+00> : vector<16x128xf32>
    %7 = tpu.matmul %5, %6, %cst {dimension_numbers = #tpu.dot_dimension_numbers<[1], [0], [0], [1], [0, 0, 1, 1], [], []>} : vector<16x216xbf16>, vector<216x128xbf16>, vector<16x128xf32> -> vector<16x128xf32>
    %c0_4 = arith.constant 0 : index
    %c0_5 = arith.constant 0 : index
    %8 = vector.load %arg3[%c0_4, %c0_5] : memref<1x128xf32, #tpu.memory_space<vmem>>, vector<1x128xf32>
    %9 = vector.broadcast %8 : vector<1x128xf32> to vector<16x128xf32>
    %10 = arith.addf %7, %9 : vector<16x128xf32>
    %cst_6 = arith.constant 1.000000e-01 : f32
    %11 = vector.broadcast %cst_6 : f32 to vector<16x128xf32>
    %12 = arith.mulf %11, %10 : vector<16x128xf32>
    %13 = arith.maximumf %10, %12 : vector<16x128xf32>
    %c0_7 = arith.constant 0 : index
    %c0_8 = arith.constant 0 : index
    %c0_9 = arith.constant 0 : index
    %14 = vector.load %arg4[%c0_7, %c0_8, %c0_9] : memref<1x16x128xf32, #tpu.memory_space<vmem>>, vector<1x16x128xf32>
    %15 = vector.shape_cast %14 : vector<1x16x128xf32> to vector<16x128xf32>
    %16 = vector.shape_cast %13 : vector<16x128xf32> to vector<1x16x128xf32>
    tpu.vector_store %arg4[%c0_7, %c0_8, %c0_9], %16 {strides = array<i32>} : memref<1x16x128xf32, #tpu.memory_space<vmem>>, vector<1x16x128xf32>,
    return
  }
  func.func @transform_0(%arg0: i32) -> (i32, i32, i32) {
    %c0_i32 = arith.constant 0 : i32
    %c0_i32_0 = arith.constant 0 : i32
    %c0_i32_1 = arith.constant 0 : i32
    return %arg0, %c0_i32, %c0_i32_0 : i32, i32, i32
  }
  func.func @transform_1(%arg0: i32) -> (i32, i32) {
    %c0_i32 = arith.constant 0 : i32
    %c0_i32_0 = arith.constant 0 : i32
    %c0_i32_1 = arith.constant 0 : i32
    return %c0_i32, %c0_i32_0 : i32, i32
  }
  func.func @transform_2(%arg0: i32) -> (i32, i32) {
    %c0_i32 = arith.constant 0 : i32
    %c0_i32_0 = arith.constant 0 : i32
    %c0_i32_1 = arith.constant 0 : i32
    return %c0_i32, %c0_i32_0 : i32, i32
  }
  func.func @transform_3(%arg0: i32) -> (i32, i32, i32) {
    %c0_i32 = arith.constant 0 : i32
    %c0_i32_0 = arith.constant 0 : i32
    %c0_i32_1 = arith.constant 0 : i32
    return %arg0, %c0_i32, %c0_i32_0 : i32, i32, i32
  }
}

</mosaic_0001>

<llo_original>
// kernel: tpu_custom_call.1
$region0: #{tpu_custom_call.1}
  #allocation0 [shape = 'u32[]', space=smem, size = 0x4, offset = 0x4, fixed_abs, tag = 'smem constant byte address 0x4 - core index']
  #allocation1 [shape = 'u32[144,128]{1,0:T(1,128)}', space=vmem, size = 0x12000, scoped, tag = 'internal scratch']
  %s0 = inlined_call_operand.vmem [shape: bf16[2,18,72], index: 0, kind: input, shape index: {}]
  %s1 = inlined_call_operand.hbm [shape: bf16[216,128], index: 1, kind: input, shape index: {}]
  %s2 = inlined_call_operand.vmem [shape: f32[1,128], index: 2, kind: input, shape index: {}]
  %s3 = inlined_call_operand.hbm [shape: f32[2,16,128], index: 3, kind: output, shape index: {}]
  %s4 = sld [smem:[#allocation0]]
  $region49: #{tpu_custom_call.1} parent=0
    _
  %s6 = ssub.s32 1, %s4
  %s7 = scalar_select 0, %s6, %s4
  $region1: #{tpu_custom_call.1} parent=0
    #allocation2 [shape = 'u8[55296]{0}', space=vmem, size = 0xd800, scoped, tag = 'input window, operand 1, single buffered']
    #allocation3 [shape = 's32[2]{0}', space=sflag, size = 0x8, scoped, tag = 'scoped memory for tpu_custom_call.1']
    #allocation4 [shape = 's32[2]{0}', space=sflag, size = 0x8, scoped, tag = 'scoped memory for tpu_custom_call.1']
    #allocation5 [shape = 'u8[16384]{0}', space=vmem, size = 0x4000, scoped, tag = 'output window, operand 0']
    %8 = vsyncpa [#allocation3], 0
    %9 = vsyncpa [#allocation4], 0
    %s10 = scalar_lea.sflag [#allocation4], 1
    %11 = vsyncpa %s10, 0
    loop: start=0, step=1, limit=4
    $region2: #{tpu_custom_call.1} parent=1 // loop_pre_header
      _
    $region3: #{tpu_custom_call.1} parent=1 // loop_header
      %s13 = sphi 0, %s17
      %p14 = scmp.ge.s32.totalorder %s13, 4
      %s23 = sphi 0, %s25
      %s26 = sphi 0, %s23
      %s27 = sphi 0, %s26
      %s43 = sphi 0, %s27
      %s47 = sphi 0, %s47
      %s49 = sphi 0, %s47
      %s50 = sphi 0, %s49
      %s64 = sphi 0, %s50
      %s68 = sphi 0, %s68
      %s70 = sphi 0, %s68
      %s71 = sphi 0, %s70
      %s85 = sphi 0, %s71
      %s91 = sphi 0, %s93
      %s94 = sphi 0, %s91
      %s95 = sphi 0, %s94
      %s111 = sphi 0, %s95
    $region4: #{tpu_custom_call.1} parent=1 // loop_header_branch
      %16 = sbr.rel (%p14) target = $region8
    $region5: #{tpu_custom_call.1} parent=1 // loop_body
      %s18 = ssub.s32 %s13, 1
      %s19 = ssub.s32 %s13, 2
      %s20 = sadd.s32 %s13, 1
      %s21 = ssub.s32 %s13, %s20
      %p22 = scmp.eq.s32.totalorder %s21, 0
      %s24 = sadd.s32 %s23, 1
      %s25 = scalar_select %p22, %s23, %s24
      %p28 = pneg %p22
      %p29 = scmp.eq.s32.totalorder %s13, 1
      %p30 = por %p28, %p29
      %p31 = scmp.ne.s32.totalorder %s23, %s26
      %p32 = scmp.eq.s32.totalorder %s13, 0
      %p33 = por %p31, %p32
      %p34 = scmp.ne.s32.totalorder %s23, %s26
      %p35 = scmp.eq.s32.totalorder %s18, 1
      %p36 = por %p34, %p35
      %p37 = scmp.ne.s32.totalorder %s26, %s27
      %p38 = scmp.eq.s32.totalorder %s18, 0
      %p39 = por %p37, %p38
      %p40 = scmp.ne.s32.totalorder %s26, %s27
      %p41 = scmp.eq.s32.totalorder %s19, 1
      %p42 = por %p40, %p41
      %p44 = scmp.ne.s32.totalorder %s27, %s43
      %p45 = scmp.eq.s32.totalorder %s19, 0
      %p46 = por %p44, %p45
      %s48 = sadd.s32 %s47, 1
      %p51 = scmp.eq.s32.totalorder %s13, 1
      %p52 = scmp.ne.s32.totalorder %s47, %s49
      %p53 = scmp.eq.s32.totalorder %s13, 0
      %p54 = por %p52, %p53
      %p55 = scmp.ne.s32.totalorder %s47, %s49
      %p56 = scmp.eq.s32.totalorder %s18, 1
      %p57 = por %p55, %p56
      %p58 = scmp.ne.s32.totalorder %s49, %s50
      %p59 = scmp.eq.s32.totalorder %s18, 0
      %p60 = por %p58, %p59
      %p61 = scmp.ne.s32.totalorder %s49, %s50
      %p62 = scmp.eq.s32.totalorder %s19, 1
      %p63 = por %p61, %p62
      %p65 = scmp.ne.s32.totalorder %s50, %s64
      %p66 = scmp.eq.s32.totalorder %s19, 0
      %p67 = por %p65, %p66
      %s69 = sadd.s32 %s68, 1
      %p72 = scmp.eq.s32.totalorder %s13, 1
      %p73 = scmp.ne.s32.totalorder %s68, %s70
      %p74 = scmp.eq.s32.totalorder %s13, 0
      %p75 = por %p73, %p74
      %p76 = scmp.ne.s32.totalorder %s68, %s70
      %p77 = scmp.eq.s32.totalorder %s18, 1
      %p78 = por %p76, %p77
      %p79 = scmp.ne.s32.totalorder %s70, %s71
      %p80 = scmp.eq.s32.totalorder %s18, 0
      %p81 = por %p79, %p80
      %p82 = scmp.ne.s32.totalorder %s70, %s71
      %p83 = scmp.eq.s32.totalorder %s19, 1
      %p84 = por %p82, %p83
      %p86 = scmp.ne.s32.totalorder %s71, %s85
      %p87 = scmp.eq.s32.totalorder %s19, 0
      %p88 = por %p86, %p87
      %s89 = ssub.s32 %s13, %s20
      %p90 = scmp.eq.s32.totalorder %s89, 0
      %s92 = sadd.s32 %s91, 1
      %s93 = scalar_select %p90, %s91, %s92
      %p96 = pneg %p90
      %p97 = scmp.eq.s32.totalorder %s13, 1
      %p98 = por %p96, %p97
      %p99 = scmp.ne.s32.totalorder %s91, %s94
      %p100 = scmp.eq.s32.totalorder %s13, 0
      %p101 = por %p99, %p100
      %p102 = scmp.ne.s32.totalorder %s91, %s94
      %p103 = scmp.eq.s32.totalorder %s18, 1
      %p104 = por %p102, %p103
      %p105 = scmp.ne.s32.totalorder %s94, %s95
      %p106 = scmp.eq.s32.totalorder %s18, 0
      %p107 = por %p105, %p106
      %p108 = scmp.ne.s32.totalorder %s94, %s95
      %p109 = scmp.eq.s32.totalorder %s19, 1
      %p110 = por %p108, %p109
      %p112 = scmp.ne.s32.totalorder %s95, %s111
      %p113 = scmp.eq.s32.totalorder %s19, 0
      %p114 = por %p112, %p113
      %p115 = scmp.le.s32.totalorder 1, %s13
      %p116 = scmp.lt.s32.totalorder %s13, 3
      %p117 = pnand %p115, %p116
      %p118 = pneg %p117
      // Predicated region
      $region9: #{tpu_custom_call.1} parent=5 // pred_check
        _
      $region10: #{tpu_custom_call.1} parent=5 // pred_check_branch
        %120 = sbr.rel (%p117) target = $region12
      $region11: #{tpu_custom_call.1} parent=5 // pred_region
        %s121 = ssub.s32 %s13, 1
        // Predicated region
        $region13: #{tpu_custom_call.1} parent=11 // pred_check
          %p122 = pneg %p60
        $region14: #{tpu_custom_call.1} parent=11 // pred_check_branch
          %124 = sbr.rel (%p122) target = $region16
        $region15: #{tpu_custom_call.1} parent=11 // pred_region
          %s126 = ssub.s32 1728, 1728
          %127 = vsyncadd [#allocation3], %s126
          %s128 = sshll.u32 [#allocation2], 4
          %s129 = int_to_ptr.vmem [resolvable:$true] %s128
          %134 = dma.hbm_to_vmem [thread:$0]  %s1, 1728, %s129, [#allocation3], 64, 64, 4
        $region16: #{tpu_custom_call.1} parent=11 // pred_fallthru
          _
        // Predicated region
        $region17: #{tpu_custom_call.1} parent=11 // pred_check
          %p135 = pneg %p81
        $region18: #{tpu_custom_call.1} parent=11 // pred_check_branch
          %137 = sbr.rel (%p135) target = $region20
        $region19: #{tpu_custom_call.1} parent=11 // pred_region
          _
        $region20: #{tpu_custom_call.1} parent=11 // pred_fallthru
          _
      $region12: #{tpu_custom_call.1} parent=5 // pred_fallthru
        _
      %p138 = scmp.lt.s32.totalorder %s13, 2
      // Predicated region
      $region21: #{tpu_custom_call.1} parent=5 // pred_check
        %p139 = pneg %p138
      $region22: #{tpu_custom_call.1} parent=5 // pred_check_branch
        %141 = sbr.rel (%p139) target = $region24
      $region23: #{tpu_custom_call.1} parent=5 // pred_region
        // Predicated region
        $region25: #{tpu_custom_call.1} parent=23 // pred_check
          %p142 = pneg %p33
        $region26: #{tpu_custom_call.1} parent=23 // pred_check_branch
          %144 = sbr.rel (%p142) target = $region28
        $region27: #{tpu_custom_call.1} parent=23 // pred_region
          %p145 = scmp.lt.s32.totalorder %s13, 1
          %s146 = scalar_select %p145, %s13, 1
          %s147 = smul.addr %s146, 3
          %s148 = smul.addr %s147, 4
          %s149 = scalar_lea.vmem %s0, %s148
        $region28: #{tpu_custom_call.1} parent=23 // pred_fallthru
          _
      $region24: #{tpu_custom_call.1} parent=5 // pred_fallthru
        _
      %p150 = scmp.le.s32.totalorder 1, %s13
      %p151 = scmp.lt.s32.totalorder %s13, 3
      %p152 = pnand %p150, %p151
      %p153 = pneg %p152
      // Predicated region
      $region29: #{tpu_custom_call.1} parent=5 // pred_check
        _
      $region30: #{tpu_custom_call.1} parent=5 // pred_check_branch
        %155 = sbr.rel (%p152) target = $region32
      $region31: #{tpu_custom_call.1} parent=5 // pred_region
        %s156 = ssub.s32 %s13, 1
        // Predicated region
        $region33: #{tpu_custom_call.1} parent=31 // pred_check
          %p157 = pneg %p60
        $region34: #{tpu_custom_call.1} parent=31 // pred_check_branch
          %159 = sbr.rel (%p157) target = $region36
        $region35: #{tpu_custom_call.1} parent=31 // pred_region
          %160 = dma.done [#allocation3], 1728
        $region36: #{tpu_custom_call.1} parent=31 // pred_fallthru
          _
        %p161 = scmp.lt.s32.totalorder %s18, 1
        %s162 = scalar_select %p161, %s18, 1
        %s163 = smul.addr %s162, 3
        %s164 = smul.addr %s163, 4
        %s165 = scalar_lea.vmem %s0, %s164
        %p166 = pneg %p39
        %p167 = pneg %p36
        %p168 = pneg %p60
        %p169 = pneg %p57
        %p170 = pneg %p81
        %p171 = pneg %p78
        %p172 = pneg %p107
        %p173 = pneg %p104
        %s174 = sand.u32 %s94, 1
        %s175 = scalar_lea.sflag [#allocation4], %s174
        %s176 = sand.u32 %s94, 1
        %s177 = smul.addr %s176, 16
        %s178 = scalar_lea.vmem [#allocation5], %s177
        %p179 = scmp.lt.s32.totalorder %s18, 1
        %s180 = scalar_select %p179, %s18, 1
        %s181 = smul.addr %s180, 3
        %s182 = smul.addr %s181, 4
        %s183 = scalar_lea.vmem %s0, %s182
        %v185 = vld [vmem:[%s183] sm:$0xf]
        %v186 = vld [vmem:[%s183 + $0x4] sm:$0xf]
        %v187 = vld [vmem:[%s183 + $0x8] sm:$0x1]
        %v190 = vunpack.c.l.b16 %v185
        %v191 = vunpack.c.l.b16 %v186
        %v192 = vpack.c.b16 %v191, %v190
        %v194 = vunpack.c.l.b16 %v187
        %v195 = vpack.c.b16 %v194, %v194
        %vm196 = vsmask.f32 7424
        %v198 = vshrl.u32 %v192, 16
        %v200 = vshll.u32 %v192, 16
        %v202 = vrot.slane %v200, 1
        %v203 = vor.u32 %v198, %v202
        %v205 = vshll.u32 %v195, 16
        %v207 = vrot.slane %v205, 1
        %v208 = vsel %vm196, %v203, %v207
        %209 = vrot.lane.b32.xlu0 %v208, 72
        %v210 = vpop.permute.xlu0 %209
        %vm211 = vcmask 1046528
        %v212 = vrot.slane %v192, 1
        %v213 = vrot.slane %v195, 1
        %v214 = vsel %vm211, %v212, %v213
        %215 = vrot.lane.b32.xlu0 %v214, 16
        %v216 = vpop.permute.xlu0 %215
        %vm217 = vcmask 588800
        %v219 = vsel %vm217, %v192, %v210
        %vm221 = vcmask 130048
        %v223 = vsel %vm221, %v210, %v216
        %v224 = vld [vmem:[#allocation2] sm:$0xf]
        %v225 = vld [vmem:[#allocation2 + $0x4] sm:$0xf]
        %v226 = vld [vmem:[#allocation2 + $0x8] sm:$0xf]
        %v227 = vld [vmem:[#allocation2 + $0xc] sm:$0xf]
        %v228 = vld [vmem:[#allocation2 + $0x10] sm:$0xf]
        %v229 = vld [vmem:[#allocation2 + $0x14] sm:$0xf]
        %v230 = vld [vmem:[#allocation2 + $0x18] sm:$0xf]
        %v231 = vld [vmem:[#allocation2 + $0x1c] sm:$0xf]
        %v232 = vld [vmem:[#allocation2 + $0x20] sm:$0xf]
        %v233 = vld [vmem:[#allocation2 + $0x24] sm:$0xf]
        %v234 = vld [vmem:[#allocation2 + $0x28] sm:$0xf]
        %v235 = vld [vmem:[#allocation2 + $0x2c] sm:$0xf]
        %v236 = vld [vmem:[#allocation2 + $0x30] sm:$0xf]
        %v237 = vld [vmem:[#allocation2 + $0x34] sm:$0xf]
        %v238 = vld [vmem:[#allocation2 + $0x38] sm:$0xf]
        %v239 = vld [vmem:[#allocation2 + $0x3c] sm:$0xf]
        %v240 = vld [vmem:[#allocation2 + $0x40] sm:$0xf]
        %v241 = vld [vmem:[#allocation2 + $0x44] sm:$0xf]
        %v242 = vld [vmem:[#allocation2 + $0x48] sm:$0xf]
        %v243 = vld [vmem:[#allocation2 + $0x4c] sm:$0xf]
        %v244 = vld [vmem:[#allocation2 + $0x50] sm:$0xf]
        %v245 = vld [vmem:[#allocation2 + $0x54] sm:$0xf]
        %v246 = vld [vmem:[#allocation2 + $0x58] sm:$0xf]
        %v247 = vld [vmem:[#allocation2 + $0x5c] sm:$0xf]
        %v248 = vld [vmem:[#allocation2 + $0x60] sm:$0xf]
        %v249 = vld [vmem:[#allocation2 + $0x64] sm:$0xf]
        %v250 = vld [vmem:[#allocation2 + $0x68] sm:$0xf]
        %v251 = vld [vmem:[%s2] sm:$0x1]
        %v253 = vlaneseq
        %v254 = vshrl.u32 %v253, 7
        %v255 = vsub.s32 0, %v254
        %v256 = vrot.slane %v251, %v255
        %v285 = vunpack.c.l.b16 %v224
        %v286 = vunpack.c.l.b16 %v225
        %v287 = vunpack.c.l.b16 %v226
        %v288 = vunpack.c.l.b16 %v227
        %v289 = vunpack.c.l.b16 %v228
        %v290 = vunpack.c.l.b16 %v229
        %v291 = vunpack.c.l.b16 %v230
        %v292 = vunpack.c.l.b16 %v231
        %v293 = vunpack.c.l.b16 %v232
        %v294 = vunpack.c.l.b16 %v233
        %v295 = vunpack.c.l.b16 %v234
        %v296 = vunpack.c.l.b16 %v235
        %v297 = vunpack.c.l.b16 %v236
        %v298 = vunpack.c.l.b16 %v237
        %v299 = vunpack.c.l.b16 %v238
        %v300 = vunpack.c.l.b16 %v239
        %v301 = vunpack.c.l.b16 %v240
        %v302 = vunpack.c.l.b16 %v241
        %v303 = vunpack.c.l.b16 %v242
        %v304 = vunpack.c.l.b16 %v243
        %v305 = vunpack.c.l.b16 %v244
        %v306 = vunpack.c.l.b16 %v245
        %v307 = vunpack.c.l.b16 %v246
        %v308 = vunpack.c.l.b16 %v247
        %v309 = vunpack.c.l.b16 %v248
        %v310 = vunpack.c.l.b16 %v249
        %v311 = vunpack.c.l.b16 %v250
        %v312 = vpack.c.b16 %v286, %v285
        %v313 = vpack.c.b16 %v288, %v287
        %v314 = vpack.c.b16 %v290, %v289
        %v315 = vpack.c.b16 %v292, %v291
        %v316 = vpack.c.b16 %v294, %v293
        %v317 = vpack.c.b16 %v296, %v295
        %v318 = vpack.c.b16 %v298, %v297
        %v319 = vpack.c.b16 %v300, %v299
        %v320 = vpack.c.b16 %v302, %v301
        %v321 = vpack.c.b16 %v304, %v303
        %v322 = vpack.c.b16 %v306, %v305
        %v323 = vpack.c.b16 %v308, %v307
        %v324 = vpack.c.b16 %v310, %v309
        %v325 = vpack.c.b16 %v311, %v311
        %vm339 = vcmask 719872
        %v340 = vsel %vm339, %v223, 0
        %vm342 = vcmask 1043456
        %v344 = vsel %vm342, %v325, 0
        %346 = vmatprep.subr.bf16.mxu0 0
        %347 = vmatpush1.bf16.msra.mxu0 %v312
        %348 = vmatprep.subr.bf16.mxu0 0
        %349 = vmatpush1.bf16.msra.mxu0 %v313
        %350 = vmatprep.subr.bf16.mxu0 0
        %351 = vmatpush1.bf16.msra.mxu0 %v314
        %352 = vmatprep.subr.bf16.mxu0 0
        %353 = vmatpush1.bf16.msra.mxu0 %v315
        %354 = vmatprep.subr.bf16.mxu0 0
        %355 = vmatpush1.bf16.msra.mxu0 %v316
        %356 = vmatprep.subr.bf16.mxu0 0
        %357 = vmatpush1.bf16.msra.mxu0 %v317
        %358 = vmatprep.subr.bf16.mxu0 0
        %359 = vmatpush1.bf16.msra.mxu0 %v318
        %360 = vmatprep.subr.bf16.mxu0 0
        %361 = vmatpush1.bf16.msra.mxu0 %v319
        %362 = vmatprep.subr.bf16.mxu0 0
        %363 = vmatpush1.bf16.msra.mxu0 %v320
        %364 = vmatprep.subr.bf16.mxu0 0
        %365 = vmatpush1.bf16.msra.mxu0 %v321
        %366 = vmatprep.subr.bf16.mxu0 0
        %367 = vmatpush1.bf16.msra.mxu0 %v322
        %368 = vmatprep.subr.bf16.mxu0 0
        %369 = vmatpush1.bf16.msra.mxu0 %v323
        %370 = vmatprep.subr.bf16.mxu0 0
        %371 = vmatpush1.bf16.msra.mxu0 %v324
        %372 = vmatprep.subr.bf16.mxu0 0
        %373 = vmatpush1.bf16.msra.mxu0 %v344
        %374 = vmatprep.subr.bf16.mxu0 0
        %375 = vmatpush1.bf16.msra.mxu0 0
        %376 = vmatprep.subr.bf16.mxu0 0
        %377 = vmatpush1.bf16.msra.mxu0 0
        %378 = vmatprep.mubr.bf16.mxu0 %v340
        %379 = vmatmul.mubr.bf16.gmra.mrb[0].mxu0 %v219
        %v380 = vpop.f32.mrb[0].mxu0
        %v381 = vadd.f32 %v256, %v380
        %v382 = vpop.f32.mrb[0].mxu0
        %v383 = vpop.f32.mrb[0].mxu0
        %v384 = vadd.f32 %v256, %v383
        %v385 = vpop.f32.mrb[0].mxu0
        %386 = vdwg.mxu0
        %v387 = vmul.f32 %v381, 0.1
        %v388 = vmul.f32 %v384, 0.1
        %v389 = vmax.f32 %v381, %v387
        %v390 = vmax.f32 %v384, %v388
        %391 = vst [vmem:[%s178] sm:$0xff] %v389
        %392 = vst [vmem:[%s178 + $0x8] sm:$0xff] %v390
        %s393 = sand.u32 %s94, 1
        %s394 = scalar_lea.sflag [#allocation4], %s393
        %s395 = sand.u32 %s94, 1
        %s396 = smul.addr %s395, 16
        %s397 = scalar_lea.vmem [#allocation5], %s396
        // Predicated region
        $region37: #{tpu_custom_call.1} parent=31 // pred_check
          %p398 = pneg %p104
        $region38: #{tpu_custom_call.1} parent=31 // pred_check_branch
          %400 = sbr.rel (%p398) target = $region40
        $region39: #{tpu_custom_call.1} parent=31 // pred_region
          %s402 = ssub.s32 256, 256
          %403 = vsyncadd %s394, %s402
          %s404 = smul.addr %s18, 2
          %s405 = smul.addr %s404, 128
          %s406 = scalar_lea.hbm %s3, %s405
          %s407 = sshll.u32 %s397, 4
          %s408 = int_to_ptr.vmem [resolvable:$true] %s407
          %413 = dma.vmem_to_hbm [thread:$0]  %s408, 256, %s406, %s394, 128, 128, 8
        $region40: #{tpu_custom_call.1} parent=31 // pred_fallthru
          _
      $region32: #{tpu_custom_call.1} parent=5 // pred_fallthru
        _
      %p414 = scmp.le.s32.totalorder 2, %s13
      // Predicated region
      $region41: #{tpu_custom_call.1} parent=5 // pred_check
        %p415 = pneg %p414
      $region42: #{tpu_custom_call.1} parent=5 // pred_check_branch
        %417 = sbr.rel (%p415) target = $region44
      $region43: #{tpu_custom_call.1} parent=5 // pred_region
        %s418 = ssub.s32 %s13, 2
        // Predicated region
        $region45: #{tpu_custom_call.1} parent=43 // pred_check
          %p419 = pneg %p110
        $region46: #{tpu_custom_call.1} parent=43 // pred_check_branch
          %421 = sbr.rel (%p419) target = $region48
        $region47: #{tpu_custom_call.1} parent=43 // pred_region
          %s422 = sand.u32 %s95, 1
          %s423 = scalar_lea.sflag [#allocation4], %s422
          %s424 = sand.u32 %s95, 1
          %s425 = smul.addr %s424, 16
          %s426 = scalar_lea.vmem [#allocation5], %s425
          %427 = dma.done %s423, 256
        $region48: #{tpu_custom_call.1} parent=43 // pred_fallthru
          _
      $region44: #{tpu_custom_call.1} parent=5 // pred_fallthru
        _
    $region6: #{tpu_custom_call.1} parent=1 // loop_footer
      %s17 = sadd.s32 1, %s13
    $region7: #{tpu_custom_call.1} parent=1 // loop_footer_branch
      %12 = sbr.rel target = $region3
    $region8: #{tpu_custom_call.1} parent=1 // loop_exit
      _
    %428 = vsyncpa [#allocation3], 1
    %s429 = scalar_lea.sflag [#allocation3], 1
    %430 = vsyncpa %s429, 1
    %431 = vsyncpa [#allocation4], 1
    %s432 = scalar_lea.sflag [#allocation4], 1
    %433 = vsyncpa %s432, 1

</llo_original>
